<compile_context>
chip_gen: v7x
topology: tpu7x:2x2x1
jax: 0.10.0
libtpu: 0.0.40
codegen_flags: <defaults>
</compile_context>

<pallas_src>
import functools

import jax
import jax.numpy as jnp
from jax.experimental import pallas as pl
from jax.experimental.pallas import tpu as pltpu


def _round_up(x: int, m: int) -> int:
    return (x + m - 1) // m * m


def _head_kernel(x_ref, p_ref, w_ref, b_ref, o_ref, acc_ref, *, inv_hw):
    # x_ref:   [TB, Cblk*HW]   (input dtype, lane-dense)
    # p_ref:   [Cblk*HW, Cblk] (0/1 block-diagonal pooling matrix, input dtype)
    # w_ref:   [Cblk, N_pad]   (classifier weight block, input dtype)
    # b_ref:   [1, N_pad]      (f32 bias)
    # o_ref:   [TB, N_pad]     (output block)
    # acc_ref: [TB, N_pad]     (f32 accumulator scratch)
    j = pl.program_id(1)

    @pl.when(j == 0)
    def _init():
        acc_ref[...] = jnp.zeros_like(acc_ref)

    # Spatial pooling on the MXU: contracts the (channel-block x spatial) lane
    # axis down to per-channel spatial sums, accumulated in f32.
    pooled = jnp.dot(x_ref[...], p_ref[...],
                     preferred_element_type=jnp.float32)          # [TB, Cblk]
    # Mean scale applied in f32 (precision), then cast for the classifier MXU op.
    pooled = (pooled * inv_hw).astype(w_ref.dtype)

    # Partial classifier matmul for this channel block, f32 accumulation.
    acc_ref[...] += jnp.dot(pooled, w_ref[...],
                            preferred_element_type=jnp.float32)   # [TB, N_pad]

    @pl.when(j == pl.num_programs(1) - 1)
    def _finalize():
        o_ref[...] = (acc_ref[...] + b_ref[...]).astype(o_ref.dtype)


def _vmem_budget_and_limit():
    try:
        cap = int(pltpu.get_tpu_info().vmem_capacity_bytes)
    except Exception:
        cap = 64 * 1024 * 1024          # conservative: v7x physical VMEM
    budget = (cap * 2) // 5             # target resident footprint (~40% of physical)
    limit = (cap * 3) // 4              # scoped-VMEM limit handed to Mosaic
    return budget, limit


def _pick_channel_block(C: int, HW: int, itemsize: int, p_budget: int = 4 << 20) -> int:
    """Largest channel block Cblk with Cblk | C, Cblk % 8 == 0, (Cblk*HW) % 128 == 0
    and a pooling matrix that fits p_budget; falls back to the full C (always a
    legal block: it equals the array extents)."""
    def p_bytes(d):
        return _round_up(d * HW, 8) * _round_up(d, 128) * itemsize

    if p_bytes(C) <= p_budget:
        return C
    best = None
    for d in range(8, C, 8):
        if C % d == 0 and (d * HW) % 128 == 0 and p_bytes(d) <= p_budget:
            best = d
    return best if best is not None else C


def _pick_batch_tile(B: int, per_row_bytes: int, fixed_bytes: int, budget: int) -> int:
    avail = max(budget - fixed_bytes, per_row_bytes)
    cap = max(1, avail // per_row_bytes)
    if B >= 16:
        cap = min(cap, B // 2)          # keep >= 2 blocks on the parallel axis (v7x: 2 TCs)
    best = None
    for tb in range(8, B + 1, 8):       # sublane-aligned divisors of B
        if B % tb == 0 and tb <= cap:
            best = tb
    return best if best is not None else B   # full batch is always a legal block


def resnet_classifier_head(x_nchw, weight, bias):
    """x_nchw: [B, C, H, W]; weight: [num_classes, C] (PyTorch nn.Linear layout); bias: [num_classes]."""
    B, C, H, W = x_nchw.shape
    num_classes = weight.shape[0]
    HW = H * W
    dtype = x_nchw.dtype
    itemsize = jnp.dtype(dtype).itemsize

    # Free, contiguous reshape: [B, C, H, W] -> [B, C*HW] (channel-major, spatial fastest).
    x2d = x_nchw.reshape(B, C * HW)

    n_pad = max(128, _round_up(num_classes, 128))
    c_blk = _pick_channel_block(C, HW, itemsize)
    n_cblk = C // c_blk

    # 0/1 block-diagonal pooling matrix (exact in any dtype); the 1/HW scale is
    # applied in f32 inside the kernel instead of being quantized into it.
    row_ch = jnp.arange(c_blk * HW, dtype=jnp.int32) // HW
    pool_mat = (row_ch[:, None] == jnp.arange(c_blk, dtype=jnp.int32)[None, :]).astype(dtype)

    w_cn = jnp.pad(weight.T.astype(dtype),
                   ((0, 0), (0, n_pad - num_classes)))                   # [C, N_pad]
    b_1n = jnp.pad(bias.astype(jnp.float32),
                   (0, n_pad - num_classes)).reshape(1, n_pad)           # [1, N_pad] f32

    # VMEM accounting with lane/sublane padding and all resident buffers.
    budget, vmem_limit = _vmem_budget_and_limit()
    lane_x = _round_up(c_blk * HW, 128)
    per_row = (2 * lane_x * itemsize          # x block (double-buffered)
               + 2 * n_pad * itemsize         # output block (double-buffered)
               + n_pad * 4)                   # f32 accumulator scratch
    fixed = (2 * _round_up(c_blk * HW, 8) * _round_up(c_blk, 128) * itemsize   # pooling matrix
             + 2 * _round_up(c_blk, 8) * n_pad * itemsize                      # weight block
             + 2 * 8 * n_pad * 4)                                              # bias
    tb = _pick_batch_tile(B, per_row, fixed, budget)

    grid = (B // tb, n_cblk)
    kernel = functools.partial(_head_kernel, inv_hw=float(1.0 / HW))

    out = pl.pallas_call(
        kernel,
        out_shape=jax.ShapeDtypeStruct((B, n_pad), dtype),
        grid_spec=pltpu.PrefetchScalarGridSpec(
            num_scalar_prefetch=0,
            grid=grid,
            in_specs=[
                pl.BlockSpec((tb, c_blk * HW), lambda i, j: (i, j)),
                pl.BlockSpec((c_blk * HW, c_blk), lambda i, j: (0, 0)),
                pl.BlockSpec((c_blk, n_pad), lambda i, j: (j, 0)),
                pl.BlockSpec((1, n_pad), lambda i, j: (0, 0)),
            ],
            out_specs=pl.BlockSpec((tb, n_pad), lambda i, j: (i, 0)),
            scratch_shapes=[pltpu.VMEM((tb, n_pad), jnp.float32)],
        ),
        compiler_params=pltpu.CompilerParams(
            dimension_semantics=("parallel", "arbitrary"),
            vmem_limit_bytes=int(vmem_limit),
        ),
    )(x2d, pool_mat, w_cn, b_1n)

    return out[:, :num_classes]


if __name__ == "__main__":
    # Small shapes consistent with the module: batch=2, in_channels=4, spatial=16x16, 10 classes.
    B, C, H, W = 2, 4, 16, 16
    NUM_CLASSES = 10

    key = jax.random.PRNGKey(0)
    kx, kw, kb = jax.random.split(key, 3)

    x = jax.random.normal(kx, (B, C, H, W), dtype=jnp.float32)
    # PyTorch nn.Linear shapes: W [out, in], b [out].
    weight = jax.random.normal(kw, (NUM_CLASSES, C), dtype=jnp.float32) * 0.1
    bias = jax.random.normal(kb, (NUM_CLASSES,), dtype=jnp.float32) * 0.1

    out = jax.block_until_ready(resnet_classifier_head(x, weight, bias))

    # Pure-JAX reference for correctness.
    ref = jnp.mean(x, axis=(2, 3)) @ weight.T + bias
    assert out.shape == (B, NUM_CLASSES)
    assert jnp.allclose(out, ref, atol=1e-4, rtol=1e-4), "mismatch vs reference"

    print("KERNEL_OK")
</pallas_src>

<mosaic_0001>
module attributes {stable_mosaic.version = 11 : i64} {
  func.func @_head_kernel(%arg0: i32, %arg1: i32, %arg2: memref<2x1024xf32, #tpu.memory_space<vmem>>, %arg3: memref<1024x4xf32, #tpu.memory_space<vmem>>, %arg4: memref<4x128xf32, #tpu.memory_space<vmem>>, %arg5: memref<1x128xf32, #tpu.memory_space<vmem>>, %arg6: memref<2x128xf32, #tpu.memory_space<vmem>>, %arg7: memref<2x128xf32, #tpu.memory_space<vmem>>) attributes {dimension_semantics = [#tpu.dimension_semantics<parallel>, #tpu.dimension_semantics<arbitrary>], iteration_bounds = array<i64: 1, 1>, scalar_prefetch = 0 : i64, scratch_operands = 1 : i64, tpu.core_type = #tpu.core_type<tc>, window_params = [{transform_indices = @transform_0, window_bounds = array<i64: 2, 1024>}, {pipeline_mode = #tpu.pipeline_mode<synchronous>, transform_indices = @transform_1, window_bounds = array<i64: 1024, 4>}, {transform_indices = @transform_2, window_bounds = array<i64: 4, 128>}, {pipeline_mode = #tpu.pipeline_mode<synchronous>, transform_indices = @transform_3, window_bounds = array<i64: 1, 128>}, {transform_indices = @transform_4, window_bounds = array<i64: 2, 128>}]} {
    %c0_i32 = arith.constant 0 : i32
    %0 = arith.cmpi eq, %arg1, %c0_i32 : i32
    %1 = arith.extui %0 : i1 to i32
    %c0_i32_0 = arith.constant 0 : i32
    %2 = arith.cmpi ne, %1, %c0_i32_0 : i32
    scf.if %2 {
      %cst_14 = arith.constant 0.000000e+00 : f32
      %16 = vector.broadcast %cst_14 : f32 to vector<2x128xf32>
      %c0_15 = arith.constant 0 : index
      %c0_16 = arith.constant 0 : index
      %17 = vector.load %arg7[%c0_15, %c0_16] : memref<2x128xf32, #tpu.memory_space<vmem>>, vector<2x128xf32>
      tpu.vector_store %arg7[%c0_15, %c0_16], %16 {strides = array<i32>} : memref<2x128xf32, #tpu.memory_space<vmem>>, vector<2x128xf32>,
    } else {
    }
    %c0 = arith.constant 0 : index
    %c0_1 = arith.constant 0 : index
    %3 = vector.load %arg2[%c0, %c0_1] : memref<2x1024xf32, #tpu.memory_space<vmem>>, vector<2x1024xf32>
    %c0_2 = arith.constant 0 : index
    %c0_3 = arith.constant 0 : index
    %4 = vector.load %arg3[%c0_2, %c0_3] : memref<1024x4xf32, #tpu.memory_space<vmem>>, vector<1024x4xf32>
    %cst = arith.constant dense<0.000000e+00> : vector<2x4xf32>
    %5 = tpu.matmul %3, %4, %cst {dimension_numbers = #tpu.dot_dimension_numbers<[1], [0], [0], [1], [0, 0, 1, 1], [], []>} : vector<2x1024xf32>, vector<1024x4xf32>, vector<2x4xf32> -> vector<2x4xf32>
    %cst_4 = arith.constant 3.906250e-03 : f32
    %6 = vector.broadcast %cst_4 : f32 to vector<2x4xf32>
    %7 = arith.mulf %5, %6 : vector<2x4xf32>
    %c0_5 = arith.constant 0 : index
    %c0_6 = arith.constant 0 : index
    %8 = vector.load %arg7[%c0_5, %c0_6] : memref<2x128xf32, #tpu.memory_space<vmem>>, vector<2x128xf32>
    %c0_7 = arith.constant 0 : index
    %c0_8 = arith.constant 0 : index
    %9 = vector.load %arg4[%c0_7, %c0_8] : memref<4x128xf32, #tpu.memory_space<vmem>>, vector<4x128xf32>
    %cst_9 = arith.constant dense<0.000000e+00> : vector<2x128xf32>
    %10 = tpu.matmul %7, %9, %cst_9 {dimension_numbers = #tpu.dot_dimension_numbers<[1], [0], [0], [1], [0, 0, 1, 1], [], []>} : vector<2x4xf32>, vector<4x128xf32>, vector<2x128xf32> -> vector<2x128xf32>
    %11 = arith.addf %8, %10 : vector<2x128xf32>
    %c0_10 = arith.constant 0 : index
    %c0_11 = arith.constant 0 : index
    %12 = vector.load %arg7[%c0_10, %c0_11] : memref<2x128xf32, #tpu.memory_space<vmem>>, vector<2x128xf32>
    tpu.vector_store %arg7[%c0_10, %c0_11], %11 {strides = array<i32>} : memref<2x128xf32, #tpu.memory_space<vmem>>, vector<2x128xf32>,
    %c0_i32_12 = arith.constant 0 : i32
    %13 = arith.cmpi eq, %arg1, %c0_i32_12 : i32
    %14 = arith.extui %13 : i1 to i32
    %c0_i32_13 = arith.constant 0 : i32
    %15 = arith.cmpi ne, %14, %c0_i32_13 : i32
    scf.if %15 {
      %c0_14 = arith.constant 0 : index
      %c0_15 = arith.constant 0 : index
      %16 = vector.load %arg7[%c0_14, %c0_15] : memref<2x128xf32, #tpu.memory_space<vmem>>, vector<2x128xf32>
      %c0_16 = arith.constant 0 : index
      %c0_17 = arith.constant 0 : index
      %17 = vector.load %arg5[%c0_16, %c0_17] : memref<1x128xf32, #tpu.memory_space<vmem>>, vector<1x128xf32>
      %18 = vector.broadcast %17 : vector<1x128xf32> to vector<2x128xf32>
      %19 = arith.addf %16, %18 : vector<2x128xf32>
      %c0_18 = arith.constant 0 : index
      %c0_19 = arith.constant 0 : index
      %20 = vector.load %arg6[%c0_18, %c0_19] : memref<2x128xf32, #tpu.memory_space<vmem>>, vector<2x128xf32>
      tpu.vector_store %arg6[%c0_18, %c0_19], %19 {strides = array<i32>} : memref<2x128xf32, #tpu.memory_space<vmem>>, vector<2x128xf32>,
    } else {
    }
    return
  }
  func.func @transform_0(%arg0: i32, %arg1: i32) -> (i32, i32) {
    %c0_i32 = arith.constant 0 : i32
    return %arg0, %arg1 : i32, i32
  }
  func.func @transform_1(%arg0: i32, %arg1: i32) -> (i32, i32) {
    %c0_i32 = arith.constant 0 : i32
    %c0_i32_0 = arith.constant 0 : i32
    %c0_i32_1 = arith.constant 0 : i32
    return %c0_i32, %c0_i32_0 : i32, i32
  }
  func.func @transform_2(%arg0: i32, %arg1: i32) -> (i32, i32) {
    %c0_i32 = arith.constant 0 : i32
    %c0_i32_0 = arith.constant 0 : i32
    return %arg1, %c0_i32 : i32, i32
  }
  func.func @transform_3(%arg0: i32, %arg1: i32) -> (i32, i32) {
    %c0_i32 = arith.constant 0 : i32
    %c0_i32_0 = arith.constant 0 : i32
    %c0_i32_1 = arith.constant 0 : i32
    return %c0_i32, %c0_i32_0 : i32, i32
  }
  func.func @transform_4(%arg0: i32, %arg1: i32) -> (i32, i32) {
    %c0_i32 = arith.constant 0 : i32
    %c0_i32_0 = arith.constant 0 : i32
    return %arg0, %c0_i32 : i32, i32
  }
}

</mosaic_0001>

<llo_original>
// kernel: tpu_custom_call.1
$region0: #{tpu_custom_call.1}
  #allocation0 [shape = 'u32[]', space=smem, size = 0x4, offset = 0x4, fixed_abs, tag = 'smem constant byte address 0x4 - core index']
  #allocation1 [shape = 'u32[144,128]{1,0:T(1,128)}', space=vmem, size = 0x12000, scoped, tag = 'internal scratch']
  #allocation2 [shape = 'f32[2,128]{1,0:T(2,128)}', space=vmem, size = 0x400, scoped, tag = 'scratch operand']
  %s0 = inlined_call_operand.vmem [shape: f32[2,1024], index: 0, kind: input, shape index: {}]
  %s1 = inlined_call_operand.vmem [shape: f32[1024,4], index: 1, kind: input, shape index: {}]
  %s2 = inlined_call_operand.vmem [shape: f32[4,128], index: 2, kind: input, shape index: {}]
  %s3 = inlined_call_operand.vmem [shape: f32[1,128], index: 3, kind: input, shape index: {}]
  %s4 = inlined_call_operand.hbm [shape: f32[2,128], index: 4, kind: output, shape index: {}]
  %s5 = sld [smem:[#allocation0]]
  $region34: #{tpu_custom_call.1} parent=0
    _
  %s7 = ssub.s32 1, %s5
  %s8 = scalar_select 0, %s7, %s5
  $region1: #{tpu_custom_call.1} parent=0
    #allocation3 [shape = 'u8[1024]{0}', space=vmem, size = 0x400, scoped, tag = 'output window, operand 0, single buffered']
    #allocation4 [shape = 's32[1]{0}', space=sflag, size = 0x4, scoped, tag = 'scoped memory for tpu_custom_call.1']
    %9 = vsyncpa [#allocation4], 0
    // Predicated region
    $region2: #{tpu_custom_call.1} parent=1 // pred_check
      _
    $region3: #{tpu_custom_call.1} parent=1 // pred_check_branch
      %11 = sbr.rel (0) target = $region5
    $region4: #{tpu_custom_call.1} parent=1 // pred_region
      _
    $region5: #{tpu_custom_call.1} parent=1 // pred_fallthru
      _
    // Predicated region
    $region6: #{tpu_custom_call.1} parent=1 // pred_check
      _
    $region7: #{tpu_custom_call.1} parent=1 // pred_check_branch
      %13 = sbr.rel (0) target = $region9
    $region8: #{tpu_custom_call.1} parent=1 // pred_region
      _
    $region9: #{tpu_custom_call.1} parent=1 // pred_fallthru
      _
    // Predicated region
    $region10: #{tpu_custom_call.1} parent=1 // pred_check
      _
    $region11: #{tpu_custom_call.1} parent=1 // pred_check_branch
      %15 = sbr.rel (0) target = $region13
    $region12: #{tpu_custom_call.1} parent=1 // pred_region
      _
    $region13: #{tpu_custom_call.1} parent=1 // pred_fallthru
      _
    // Predicated region
    $region14: #{tpu_custom_call.1} parent=1 // pred_check
      _
    $region15: #{tpu_custom_call.1} parent=1 // pred_check_branch
      %17 = sbr.rel (0) target = $region17
    $region16: #{tpu_custom_call.1} parent=1 // pred_region
      _
    $region17: #{tpu_custom_call.1} parent=1 // pred_fallthru
      _
    %p18 = scmp.eq.s32.totalorder 0, 0
    // Predicated region
    $region18: #{tpu_custom_call.1} parent=1 // pred_check
      %p19 = pneg %p18
    $region19: #{tpu_custom_call.1} parent=1 // pred_check_branch
      %21 = sbr.rel (%p19) target = $region21
    $region20: #{tpu_custom_call.1} parent=1 // pred_region
      %22 = vst [vmem:[#allocation2] sm:$0x3] 0.0
    $region21: #{tpu_custom_call.1} parent=1 // pred_fallthru
      _
    %v23 = vld [vmem:[%s0] sm:$0xff]
    %v24 = vld [vmem:[%s0 + $0x8] sm:$0xff]
    %v25 = vld [vmem:[%s1] sm:$0xff]
    %v26 = vld [vmem:[%s1 + $0x8] sm:$0xff]
    %v27 = vld [vmem:[%s1 + $0x10] sm:$0xff]
    %v28 = vld [vmem:[%s1 + $0x18] sm:$0xff]
    %v29 = vld [vmem:[%s1 + $0x20] sm:$0xff]
    %v30 = vld [vmem:[%s1 + $0x28] sm:$0xff]
    %v31 = vld [vmem:[%s1 + $0x30] sm:$0xff]
    %v32 = vld [vmem:[%s1 + $0x38] sm:$0xff]
    %v33 = vld [vmem:[%s1 + $0x40] sm:$0xff]
    %v34 = vld [vmem:[%s1 + $0x48] sm:$0xff]
    %v35 = vld [vmem:[%s1 + $0x50] sm:$0xff]
    %v36 = vld [vmem:[%s1 + $0x58] sm:$0xff]
    %v37 = vld [vmem:[%s1 + $0x60] sm:$0xff]
    %v38 = vld [vmem:[%s1 + $0x68] sm:$0xff]
    %v39 = vld [vmem:[%s1 + $0x70] sm:$0xff]
    %v40 = vld [vmem:[%s1 + $0x78] sm:$0xff]
    %v41 = vld [vmem:[%s1 + $0x80] sm:$0xff]
    %v42 = vld [vmem:[%s1 + $0x88] sm:$0xff]
    %v43 = vld [vmem:[%s1 + $0x90] sm:$0xff]
    %v44 = vld [vmem:[%s1 + $0x98] sm:$0xff]
    %v45 = vld [vmem:[%s1 + $0xa0] sm:$0xff]
    %v46 = vld [vmem:[%s1 + $0xa8] sm:$0xff]
    %v47 = vld [vmem:[%s1 + $0xb0] sm:$0xff]
    %v48 = vld [vmem:[%s1 + $0xb8] sm:$0xff]
    %v49 = vld [vmem:[%s1 + $0xc0] sm:$0xff]
    %v50 = vld [vmem:[%s1 + $0xc8] sm:$0xff]
    %v51 = vld [vmem:[%s1 + $0xd0] sm:$0xff]
    %v52 = vld [vmem:[%s1 + $0xd8] sm:$0xff]
    %v53 = vld [vmem:[%s1 + $0xe0] sm:$0xff]
    %v54 = vld [vmem:[%s1 + $0xe8] sm:$0xff]
    %v55 = vld [vmem:[%s1 + $0xf0] sm:$0xff]
    %v56 = vld [vmem:[%s1 + $0xf8] sm:$0xff]
    %v57 = vld [vmem:[%s1 + $0x100] sm:$0xff]
    %v58 = vld [vmem:[%s1 + $0x108] sm:$0xff]
    %v59 = vld [vmem:[%s1 + $0x110] sm:$0xff]
    %v60 = vld [vmem:[%s1 + $0x118] sm:$0xff]
    %v61 = vld [vmem:[%s1 + $0x120] sm:$0xff]
    %v62 = vld [vmem:[%s1 + $0x128] sm:$0xff]
    %v63 = vld [vmem:[%s1 + $0x130] sm:$0xff]
    %v64 = vld [vmem:[%s1 + $0x138] sm:$0xff]
    %v65 = vld [vmem:[%s1 + $0x140] sm:$0xff]
    %v66 = vld [vmem:[%s1 + $0x148] sm:$0xff]
    %v67 = vld [vmem:[%s1 + $0x150] sm:$0xff]
    %v68 = vld [vmem:[%s1 + $0x158] sm:$0xff]
    %v69 = vld [vmem:[%s1 + $0x160] sm:$0xff]
    %v70 = vld [vmem:[%s1 + $0x168] sm:$0xff]
    %v71 = vld [vmem:[%s1 + $0x170] sm:$0xff]
    %v72 = vld [vmem:[%s1 + $0x178] sm:$0xff]
    %v73 = vld [vmem:[%s1 + $0x180] sm:$0xff]
    %v74 = vld [vmem:[%s1 + $0x188] sm:$0xff]
    %v75 = vld [vmem:[%s1 + $0x190] sm:$0xff]
    %v76 = vld [vmem:[%s1 + $0x198] sm:$0xff]
    %v77 = vld [vmem:[%s1 + $0x1a0] sm:$0xff]
    %v78 = vld [vmem:[%s1 + $0x1a8] sm:$0xff]
    %v79 = vld [vmem:[%s1 + $0x1b0] sm:$0xff]
    %v80 = vld [vmem:[%s1 + $0x1b8] sm:$0xff]
    %v81 = vld [vmem:[%s1 + $0x1c0] sm:$0xff]
    %v82 = vld [vmem:[%s1 + $0x1c8] sm:$0xff]
    %v83 = vld [vmem:[%s1 + $0x1d0] sm:$0xff]
    %v84 = vld [vmem:[%s1 + $0x1d8] sm:$0xff]
    %v85 = vld [vmem:[%s1 + $0x1e0] sm:$0xff]
    %v86 = vld [vmem:[%s1 + $0x1e8] sm:$0xff]
    %v87 = vld [vmem:[%s1 + $0x1f0] sm:$0xff]
    %v88 = vld [vmem:[%s1 + $0x1f8] sm:$0xff]
    %v89 = vld [vmem:[%s1 + $0x200] sm:$0xff]
    %v90 = vld [vmem:[%s1 + $0x208] sm:$0xff]
    %v91 = vld [vmem:[%s1 + $0x210] sm:$0xff]
    %v92 = vld [vmem:[%s1 + $0x218] sm:$0xff]
    %v93 = vld [vmem:[%s1 + $0x220] sm:$0xff]
    %v94 = vld [vmem:[%s1 + $0x228] sm:$0xff]
    %v95 = vld [vmem:[%s1 + $0x230] sm:$0xff]
    %v96 = vld [vmem:[%s1 + $0x238] sm:$0xff]
    %v97 = vld [vmem:[%s1 + $0x240] sm:$0xff]
    %v98 = vld [vmem:[%s1 + $0x248] sm:$0xff]
    %v99 = vld [vmem:[%s1 + $0x250] sm:$0xff]
    %v100 = vld [vmem:[%s1 + $0x258] sm:$0xff]
    %v101 = vld [vmem:[%s1 + $0x260] sm:$0xff]
    %v102 = vld [vmem:[%s1 + $0x268] sm:$0xff]
    %v103 = vld [vmem:[%s1 + $0x270] sm:$0xff]
    %v104 = vld [vmem:[%s1 + $0x278] sm:$0xff]
    %v105 = vld [vmem:[%s1 + $0x280] sm:$0xff]
    %v106 = vld [vmem:[%s1 + $0x288] sm:$0xff]
    %v107 = vld [vmem:[%s1 + $0x290] sm:$0xff]
    %v108 = vld [vmem:[%s1 + $0x298] sm:$0xff]
    %v109 = vld [vmem:[%s1 + $0x2a0] sm:$0xff]
    %v110 = vld [vmem:[%s1 + $0x2a8] sm:$0xff]
    %v111 = vld [vmem:[%s1 + $0x2b0] sm:$0xff]
    %v112 = vld [vmem:[%s1 + $0x2b8] sm:$0xff]
    %v113 = vld [vmem:[%s1 + $0x2c0] sm:$0xff]
    %v114 = vld [vmem:[%s1 + $0x2c8] sm:$0xff]
    %v115 = vld [vmem:[%s1 + $0x2d0] sm:$0xff]
    %v116 = vld [vmem:[%s1 + $0x2d8] sm:$0xff]
    %v117 = vld [vmem:[%s1 + $0x2e0] sm:$0xff]
    %v118 = vld [vmem:[%s1 + $0x2e8] sm:$0xff]
    %v119 = vld [vmem:[%s1 + $0x2f0] sm:$0xff]
    %v120 = vld [vmem:[%s1 + $0x2f8] sm:$0xff]
    %v121 = vld [vmem:[%s1 + $0x300] sm:$0xff]
    %v122 = vld [vmem:[%s1 + $0x308] sm:$0xff]
    %v123 = vld [vmem:[%s1 + $0x310] sm:$0xff]
    %v124 = vld [vmem:[%s1 + $0x318] sm:$0xff]
    %v125 = vld [vmem:[%s1 + $0x320] sm:$0xff]
    %v126 = vld [vmem:[%s1 + $0x328] sm:$0xff]
    %v127 = vld [vmem:[%s1 + $0x330] sm:$0xff]
    %v128 = vld [vmem:[%s1 + $0x338] sm:$0xff]
    %v129 = vld [vmem:[%s1 + $0x340] sm:$0xff]
    %v130 = vld [vmem:[%s1 + $0x348] sm:$0xff]
    %v131 = vld [vmem:[%s1 + $0x350] sm:$0xff]
    %v132 = vld [vmem:[%s1 + $0x358] sm:$0xff]
    %v133 = vld [vmem:[%s1 + $0x360] sm:$0xff]
    %v134 = vld [vmem:[%s1 + $0x368] sm:$0xff]
    %v135 = vld [vmem:[%s1 + $0x370] sm:$0xff]
    %v136 = vld [vmem:[%s1 + $0x378] sm:$0xff]
    %v137 = vld [vmem:[%s1 + $0x380] sm:$0xff]
    %v138 = vld [vmem:[%s1 + $0x388] sm:$0xff]
    %v139 = vld [vmem:[%s1 + $0x390] sm:$0xff]
    %v140 = vld [vmem:[%s1 + $0x398] sm:$0xff]
    %v141 = vld [vmem:[%s1 + $0x3a0] sm:$0xff]
    %v142 = vld [vmem:[%s1 + $0x3a8] sm:$0xff]
    %v143 = vld [vmem:[%s1 + $0x3b0] sm:$0xff]
    %v144 = vld [vmem:[%s1 + $0x3b8] sm:$0xff]
    %v145 = vld [vmem:[%s1 + $0x3c0] sm:$0xff]
    %v146 = vld [vmem:[%s1 + $0x3c8] sm:$0xff]
    %v147 = vld [vmem:[%s1 + $0x3d0] sm:$0xff]
    %v148 = vld [vmem:[%s1 + $0x3d8] sm:$0xff]
    %v149 = vld [vmem:[%s1 + $0x3e0] sm:$0xff]
    %v150 = vld [vmem:[%s1 + $0x3e8] sm:$0xff]
    %v151 = vld [vmem:[%s1 + $0x3f0] sm:$0xff]
    %v152 = vld [vmem:[%s1 + $0x3f8] sm:$0xff]
    %v155 = vcombine.high %v23, %v23
    %v157 = vunpack.c.l.s4 1983009808
    %v158 = vunpack.c.0.s8 %v157
    %v159 = vlaneseq
    %v160 = vshrl.u32 %v159, 7
    %v161 = vsub.s32 %v158, %v160
    %v162 = vrot.slane %v23, %v161
    %v164 = vunpack.c.l.s4 1983009808
    %v165 = vunpack.c.0.s8 %v164
    %v166 = vlaneseq
    %v167 = vshrl.u32 %v166, 7
    %v168 = vsub.s32 %v165, %v167
    %v169 = vrot.slane %v155, %v168
    %v170 = vcombine.high %v162, %v162
    %v171 = vcombine.high %v169, %v169
    %v172 = vcombine.high %v24, %v24
    %v174 = vunpack.c.l.s4 1983009808
    %v175 = vunpack.c.0.s8 %v174
    %v176 = vlaneseq
    %v177 = vshrl.u32 %v176, 7
    %v178 = vsub.s32 %v175, %v177
    %v179 = vrot.slane %v24, %v178
    %v181 = vunpack.c.l.s4 1983009808
    %v182 = vunpack.c.0.s8 %v181
    %v183 = vlaneseq
    %v184 = vshrl.u32 %v183, 7
    %v185 = vsub.s32 %v182, %v184
    %v186 = vrot.slane %v172, %v185
    %v187 = vcombine.high %v179, %v179
    %v188 = vcombine.high %v186, %v186
    %197 = vmatprep.subr.mxu0 0.0
    %198 = vmatpush1.msra.mxu0 %v25
    %199 = vmatprep.subr.mxu0 0.0
    %200 = vmatpush1.msra.mxu0 %v26
    %201 = vmatprep.subr.mxu0 0.0
    %202 = vmatpush1.msra.mxu0 %v27
    %203 = vmatprep.subr.mxu0 0.0
    %204 = vmatpush1.msra.mxu0 %v28
    %205 = vmatprep.subr.mxu0 0.0
    %206 = vmatpush1.msra.mxu0 %v29
    %207 = vmatprep.subr.mxu0 0.0
    %208 = vmatpush1.msra.mxu0 %v30
    %209 = vmatprep.subr.mxu0 0.0
    %210 = vmatpush1.msra.mxu0 %v31
    %211 = vmatprep.subr.mxu0 0.0
    %212 = vmatpush1.msra.mxu0 %v32
    %213 = vmatprep.subr.mxu0 0.0
    %214 = vmatpush1.msra.mxu0 %v33
    %215 = vmatprep.subr.mxu0 0.0
    %216 = vmatpush1.msra.mxu0 %v34
    %217 = vmatprep.subr.mxu0 0.0
    %218 = vmatpush1.msra.mxu0 %v35
    %219 = vmatprep.subr.mxu0 0.0
    %220 = vmatpush1.msra.mxu0 %v36
    %221 = vmatprep.subr.mxu0 0.0
    %222 = vmatpush1.msra.mxu0 %v37
    %223 = vmatprep.subr.mxu0 0.0
    %224 = vmatpush1.msra.mxu0 %v38
    %225 = vmatprep.subr.mxu0 0.0
    %226 = vmatpush1.msra.mxu0 %v39
    %227 = vmatprep.subr.mxu0 0.0
    %228 = vmatpush1.msra.mxu0 %v40
    %229 = vmatprep.subr.mxu0 0.0
    %230 = vmatpush1.msra.mxu0 %v41
    %231 = vmatprep.subr.mxu0 0.0
    %232 = vmatpush1.msra.mxu0 %v42
    %233 = vmatprep.subr.mxu0 0.0
    %234 = vmatpush1.msra.mxu0 %v43
    %235 = vmatprep.subr.mxu0 0.0
    %236 = vmatpush1.msra.mxu0 %v44
    %237 = vmatprep.subr.mxu0 0.0
    %238 = vmatpush1.msra.mxu0 %v45
    %239 = vmatprep.subr.mxu0 0.0
    %240 = vmatpush1.msra.mxu0 %v46
    %241 = vmatprep.subr.mxu0 0.0
    %242 = vmatpush1.msra.mxu0 %v47
    %243 = vmatprep.subr.mxu0 0.0
    %244 = vmatpush1.msra.mxu0 %v48
    %245 = vmatprep.subr.mxu0 0.0
    %246 = vmatpush1.msra.mxu0 %v49
    %247 = vmatprep.subr.mxu0 0.0
    %248 = vmatpush1.msra.mxu0 %v50
    %249 = vmatprep.subr.mxu0 0.0
    %250 = vmatpush1.msra.mxu0 %v51
    %251 = vmatprep.subr.mxu0 0.0
    %252 = vmatpush1.msra.mxu0 %v52
    %253 = vmatprep.subr.mxu0 0.0
    %254 = vmatpush1.msra.mxu0 %v53
    %255 = vmatprep.subr.mxu0 0.0
    %256 = vmatpush1.msra.mxu0 %v54
    %257 = vmatprep.subr.mxu0 0.0
    %258 = vmatpush1.msra.mxu0 %v55
    %259 = vmatprep.subr.mxu0 0.0
    %260 = vmatpush1.msra.mxu0 %v56
    %261 = vmatprep.mubr.f32.mxu0 %v170
    %262 = vmatmul.mubr.f32.gmra.mrb[0].mxu0 %v162
    %v263 = vpop.f32.mrb[0].mxu0
    %v264 = vadd.f32 0.0, %v263
    %v265 = vpop.f32.mrb[0].mxu0
    %266 = vdwg.mxu0
    %267 = vmatprep.subr.mxu0 0.0
    %268 = vmatpush1.msra.mxu0 %v57
    %269 = vmatprep.subr.mxu0 0.0
    %270 = vmatpush1.msra.mxu0 %v58
    %271 = vmatprep.subr.mxu0 0.0
    %272 = vmatpush1.msra.mxu0 %v59
    %273 = vmatprep.subr.mxu0 0.0
    %274 = vmatpush1.msra.mxu0 %v60
    %275 = vmatprep.subr.mxu0 0.0
    %276 = vmatpush1.msra.mxu0 %v61
    %277 = vmatprep.subr.mxu0 0.0
    %278 = vmatpush1.msra.mxu0 %v62
    %279 = vmatprep.subr.mxu0 0.0
    %280 = vmatpush1.msra.mxu0 %v63
    %281 = vmatprep.subr.mxu0 0.0
    %282 = vmatpush1.msra.mxu0 %v64
    %283 = vmatprep.subr.mxu0 0.0
    %284 = vmatpush1.msra.mxu0 %v65
    %285 = vmatprep.subr.mxu0 0.0
    %286 = vmatpush1.msra.mxu0 %v66
    %287 = vmatprep.subr.mxu0 0.0
    %288 = vmatpush1.msra.mxu0 %v67
    %289 = vmatprep.subr.mxu0 0.0
    %290 = vmatpush1.msra.mxu0 %v68
    %291 = vmatprep.subr.mxu0 0.0
    %292 = vmatpush1.msra.mxu0 %v69
    %293 = vmatprep.subr.mxu0 0.0
    %294 = vmatpush1.msra.mxu0 %v70
    %295 = vmatprep.subr.mxu0 0.0
    %296 = vmatpush1.msra.mxu0 %v71
    %297 = vmatprep.subr.mxu0 0.0
    %298 = vmatpush1.msra.mxu0 %v72
    %299 = vmatprep.subr.mxu0 0.0
    %300 = vmatpush1.msra.mxu0 %v73
    %301 = vmatprep.subr.mxu0 0.0
    %302 = vmatpush1.msra.mxu0 %v74
    %303 = vmatprep.subr.mxu0 0.0
    %304 = vmatpush1.msra.mxu0 %v75
    %305 = vmatprep.subr.mxu0 0.0
    %306 = vmatpush1.msra.mxu0 %v76
    %307 = vmatprep.subr.mxu0 0.0
    %308 = vmatpush1.msra.mxu0 %v77
    %309 = vmatprep.subr.mxu0 0.0
    %310 = vmatpush1.msra.mxu0 %v78
    %311 = vmatprep.subr.mxu0 0.0
    %312 = vmatpush1.msra.mxu0 %v79
    %313 = vmatprep.subr.mxu0 0.0
    %314 = vmatpush1.msra.mxu0 %v80
    %315 = vmatprep.subr.mxu0 0.0
    %316 = vmatpush1.msra.mxu0 %v81
    %317 = vmatprep.subr.mxu0 0.0
    %318 = vmatpush1.msra.mxu0 %v82
    %319 = vmatprep.subr.mxu0 0.0
    %320 = vmatpush1.msra.mxu0 %v83
    %321 = vmatprep.subr.mxu0 0.0
    %322 = vmatpush1.msra.mxu0 %v84
    %323 = vmatprep.subr.mxu0 0.0
    %324 = vmatpush1.msra.mxu0 %v85
    %325 = vmatprep.subr.mxu0 0.0
    %326 = vmatpush1.msra.mxu0 %v86
    %327 = vmatprep.subr.mxu0 0.0
    %328 = vmatpush1.msra.mxu0 %v87
    %329 = vmatprep.subr.mxu0 0.0
    %330 = vmatpush1.msra.mxu0 %v88
    %331 = vmatprep.mubr.f32.mxu0 %v171
    %332 = vmatmul.mubr.f32.gmra.mrb[0].mxu0 %v169
    %v333 = vpop.f32.mrb[0].mxu0
    %v334 = vadd.f32 %v264, %v333
    %v335 = vpop.f32.mrb[0].mxu0
    %336 = vdwg.mxu0
    %337 = vmatprep.subr.mxu0 0.0
    %338 = vmatpush1.msra.mxu0 %v89
    %339 = vmatprep.subr.mxu0 0.0
    %340 = vmatpush1.msra.mxu0 %v90
    %341 = vmatprep.subr.mxu0 0.0
    %342 = vmatpush1.msra.mxu0 %v91
    %343 = vmatprep.subr.mxu0 0.0
    %344 = vmatpush1.msra.mxu0 %v92
    %345 = vmatprep.subr.mxu0 0.0
    %346 = vmatpush1.msra.mxu0 %v93
    %347 = vmatprep.subr.mxu0 0.0
    %348 = vmatpush1.msra.mxu0 %v94
    %349 = vmatprep.subr.mxu0 0.0
    %350 = vmatpush1.msra.mxu0 %v95
    %351 = vmatprep.subr.mxu0 0.0
    %352 = vmatpush1.msra.mxu0 %v96
    %353 = vmatprep.subr.mxu0 0.0
    %354 = vmatpush1.msra.mxu0 %v97
    %355 = vmatprep.subr.mxu0 0.0
    %356 = vmatpush1.msra.mxu0 %v98
    %357 = vmatprep.subr.mxu0 0.0
    %358 = vmatpush1.msra.mxu0 %v99
    %359 = vmatprep.subr.mxu0 0.0
    %360 = vmatpush1.msra.mxu0 %v100
    %361 = vmatprep.subr.mxu0 0.0
    %362 = vmatpush1.msra.mxu0 %v101
    %363 = vmatprep.subr.mxu0 0.0
    %364 = vmatpush1.msra.mxu0 %v102
    %365 = vmatprep.subr.mxu0 0.0
    %366 = vmatpush1.msra.mxu0 %v103
    %367 = vmatprep.subr.mxu0 0.0
    %368 = vmatpush1.msra.mxu0 %v104
    %369 = vmatprep.subr.mxu0 0.0
    %370 = vmatpush1.msra.mxu0 %v105
    %371 = vmatprep.subr.mxu0 0.0
    %372 = vmatpush1.msra.mxu0 %v106
    %373 = vmatprep.subr.mxu0 0.0
    %374 = vmatpush1.msra.mxu0 %v107
    %375 = vmatprep.subr.mxu0 0.0
    %376 = vmatpush1.msra.mxu0 %v108
    %377 = vmatprep.subr.mxu0 0.0
    %378 = vmatpush1.msra.mxu0 %v109
    %379 = vmatprep.subr.mxu0 0.0
    %380 = vmatpush1.msra.mxu0 %v110
    %381 = vmatprep.subr.mxu0 0.0
    %382 = vmatpush1.msra.mxu0 %v111
    %383 = vmatprep.subr.mxu0 0.0
    %384 = vmatpush1.msra.mxu0 %v112
    %385 = vmatprep.subr.mxu0 0.0
    %386 = vmatpush1.msra.mxu0 %v113
    %387 = vmatprep.subr.mxu0 0.0
    %388 = vmatpush1.msra.mxu0 %v114
    %389 = vmatprep.subr.mxu0 0.0
    %390 = vmatpush1.msra.mxu0 %v115
    %391 = vmatprep.subr.mxu0 0.0
    %392 = vmatpush1.msra.mxu0 %v116
    %393 = vmatprep.subr.mxu0 0.0
    %394 = vmatpush1.msra.mxu0 %v117
    %395 = vmatprep.subr.mxu0 0.0
    %396 = vmatpush1.msra.mxu0 %v118
    %397 = vmatprep.subr.mxu0 0.0
    %398 = vmatpush1.msra.mxu0 %v119
    %399 = vmatprep.subr.mxu0 0.0
    %400 = vmatpush1.msra.mxu0 %v120
    %401 = vmatprep.mubr.f32.mxu0 %v187
    %402 = vmatmul.mubr.f32.gmra.mrb[0].mxu0 %v179
    %v403 = vpop.f32.mrb[0].mxu0
    %v404 = vadd.f32 %v334, %v403
    %v405 = vpop.f32.mrb[0].mxu0
    %406 = vdwg.mxu0
    %407 = vmatprep.subr.mxu0 0.0
    %408 = vmatpush1.msra.mxu0 %v121
    %409 = vmatprep.subr.mxu0 0.0
    %410 = vmatpush1.msra.mxu0 %v122
    %411 = vmatprep.subr.mxu0 0.0
    %412 = vmatpush1.msra.mxu0 %v123
    %413 = vmatprep.subr.mxu0 0.0
    %414 = vmatpush1.msra.mxu0 %v124
    %415 = vmatprep.subr.mxu0 0.0
    %416 = vmatpush1.msra.mxu0 %v125
    %417 = vmatprep.subr.mxu0 0.0
    %418 = vmatpush1.msra.mxu0 %v126
    %419 = vmatprep.subr.mxu0 0.0
    %420 = vmatpush1.msra.mxu0 %v127
    %421 = vmatprep.subr.mxu0 0.0
    %422 = vmatpush1.msra.mxu0 %v128
    %423 = vmatprep.subr.mxu0 0.0
    %424 = vmatpush1.msra.mxu0 %v129
    %425 = vmatprep.subr.mxu0 0.0
    %426 = vmatpush1.msra.mxu0 %v130
    %427 = vmatprep.subr.mxu0 0.0
    %428 = vmatpush1.msra.mxu0 %v131
    %429 = vmatprep.subr.mxu0 0.0
    %430 = vmatpush1.msra.mxu0 %v132
    %431 = vmatprep.subr.mxu0 0.0
    %432 = vmatpush1.msra.mxu0 %v133
    %433 = vmatprep.subr.mxu0 0.0
    %434 = vmatpush1.msra.mxu0 %v134
    %435 = vmatprep.subr.mxu0 0.0
    %436 = vmatpush1.msra.mxu0 %v135
    %437 = vmatprep.subr.mxu0 0.0
    %438 = vmatpush1.msra.mxu0 %v136
    %439 = vmatprep.subr.mxu0 0.0
    %440 = vmatpush1.msra.mxu0 %v137
    %441 = vmatprep.subr.mxu0 0.0
    %442 = vmatpush1.msra.mxu0 %v138
    %443 = vmatprep.subr.mxu0 0.0
    %444 = vmatpush1.msra.mxu0 %v139
    %445 = vmatprep.subr.mxu0 0.0
    %446 = vmatpush1.msra.mxu0 %v140
    %447 = vmatprep.subr.mxu0 0.0
    %448 = vmatpush1.msra.mxu0 %v141
    %449 = vmatprep.subr.mxu0 0.0
    %450 = vmatpush1.msra.mxu0 %v142
    %451 = vmatprep.subr.mxu0 0.0
    %452 = vmatpush1.msra.mxu0 %v143
    %453 = vmatprep.subr.mxu0 0.0
    %454 = vmatpush1.msra.mxu0 %v144
    %455 = vmatprep.subr.mxu0 0.0
    %456 = vmatpush1.msra.mxu0 %v145
    %457 = vmatprep.subr.mxu0 0.0
    %458 = vmatpush1.msra.mxu0 %v146
    %459 = vmatprep.subr.mxu0 0.0
    %460 = vmatpush1.msra.mxu0 %v147
    %461 = vmatprep.subr.mxu0 0.0
    %462 = vmatpush1.msra.mxu0 %v148
    %463 = vmatprep.subr.mxu0 0.0
    %464 = vmatpush1.msra.mxu0 %v149
    %465 = vmatprep.subr.mxu0 0.0
    %466 = vmatpush1.msra.mxu0 %v150
    %467 = vmatprep.subr.mxu0 0.0
    %468 = vmatpush1.msra.mxu0 %v151
    %469 = vmatprep.subr.mxu0 0.0
    %470 = vmatpush1.msra.mxu0 %v152
    %471 = vmatprep.mubr.f32.mxu0 %v188
    %472 = vmatmul.mubr.f32.gmra.mrb[0].mxu0 %v186
    %v473 = vpop.f32.mrb[0].mxu0
    %v474 = vadd.f32 %v404, %v473
    %v475 = vpop.f32.mrb[0].mxu0
    %476 = vdwg.mxu0
    %v477 = vmul.f32 %v474, 0.00390625
    %v478 = vld [vmem:[#allocation2] sm:$0x3]
    %v479 = vld [vmem:[%s2] sm:$0xf]
    %vm480 = vcmask 31744
    %v482 = vsel %vm480, %v477, 0
    %vm484 = vcmask 1043456
    %v486 = vsel %vm484, %v479, 0
    %488 = vmatprep.subr.mxu0 0.0
    %489 = vmatpush1.msra.mxu0 %v486
    %490 = vmatprep.subr.mxu0 0.0
    %491 = vmatpush1.msra.mxu0 0.0
    %492 = vmatprep.subr.mxu0 0.0
    %493 = vmatpush1.msra.mxu0 0.0
    %494 = vmatprep.subr.mxu0 0.0
    %495 = vmatpush1.msra.mxu0 0.0
    %496 = vmatprep.subr.mxu0 0.0
    %497 = vmatpush1.msra.mxu0 0.0
    %498 = vmatprep.subr.mxu0 0.0
    %499 = vmatpush1.msra.mxu0 0.0
    %500 = vmatprep.subr.mxu0 0.0
    %501 = vmatpush1.msra.mxu0 0.0
    %502 = vmatprep.subr.mxu0 0.0
    %503 = vmatpush1.msra.mxu0 0.0
    %504 = vmatprep.subr.mxu0 0.0
    %505 = vmatpush1.msra.mxu0 0.0
    %506 = vmatprep.subr.mxu0 0.0
    %507 = vmatpush1.msra.mxu0 0.0
    %508 = vmatprep.subr.mxu0 0.0
    %509 = vmatpush1.msra.mxu0 0.0
    %510 = vmatprep.subr.mxu0 0.0
    %511 = vmatpush1.msra.mxu0 0.0
    %512 = vmatprep.subr.mxu0 0.0
    %513 = vmatpush1.msra.mxu0 0.0
    %514 = vmatprep.subr.mxu0 0.0
    %515 = vmatpush1.msra.mxu0 0.0
    %516 = vmatprep.subr.mxu0 0.0
    %517 = vmatpush1.msra.mxu0 0.0
    %518 = vmatprep.subr.mxu0 0.0
    %519 = vmatpush1.msra.mxu0 0.0
    %520 = vmatprep.subr.mxu0 0.0
    %521 = vmatpush1.msra.mxu0 0.0
    %522 = vmatprep.subr.mxu0 0.0
    %523 = vmatpush1.msra.mxu0 0.0
    %524 = vmatprep.subr.mxu0 0.0
    %525 = vmatpush1.msra.mxu0 0.0
    %526 = vmatprep.subr.mxu0 0.0
    %527 = vmatpush1.msra.mxu0 0.0
    %528 = vmatprep.subr.mxu0 0.0
    %529 = vmatpush1.msra.mxu0 0.0
    %530 = vmatprep.subr.mxu0 0.0
    %531 = vmatpush1.msra.mxu0 0.0
    %532 = vmatprep.subr.mxu0 0.0
    %533 = vmatpush1.msra.mxu0 0.0
    %534 = vmatprep.subr.mxu0 0.0
    %535 = vmatpush1.msra.mxu0 0.0
    %536 = vmatprep.subr.mxu0 0.0
    %537 = vmatpush1.msra.mxu0 0.0
    %538 = vmatprep.subr.mxu0 0.0
    %539 = vmatpush1.msra.mxu0 0.0
    %540 = vmatprep.subr.mxu0 0.0
    %541 = vmatpush1.msra.mxu0 0.0
    %542 = vmatprep.subr.mxu0 0.0
    %543 = vmatpush1.msra.mxu0 0.0
    %544 = vmatprep.subr.mxu0 0.0
    %545 = vmatpush1.msra.mxu0 0.0
    %546 = vmatprep.subr.mxu0 0.0
    %547 = vmatpush1.msra.mxu0 0.0
    %548 = vmatprep.subr.mxu0 0.0
    %549 = vmatpush1.msra.mxu0 0.0
    %550 = vmatprep.subr.mxu0 0.0
    %551 = vmatpush1.msra.mxu0 0.0
    %552 = vmatprep.mubr.f32.mxu0 0.0
    %553 = vmatmul.mubr.f32.gmra.mrb[0].mxu0 %v482
    %v554 = vpop.f32.mrb[0].mxu0
    %v555 = vadd.f32 0.0, %v554
    %v556 = vpop.f32.mrb[0].mxu0
    %557 = vdwg.mxu0
    %v558 = vadd.f32 %v478, %v555
    %559 = vst [vmem:[#allocation2] sm:$0x3] %v558
    // Predicated region
    $region22: #{tpu_custom_call.1} parent=1 // pred_check
      %p560 = pneg %p18
    $region23: #{tpu_custom_call.1} parent=1 // pred_check_branch
      %562 = sbr.rel (%p560) target = $region25
    $region24: #{tpu_custom_call.1} parent=1 // pred_region
      %v563 = vld [vmem:[#allocation2] sm:$0x3]
      %v564 = vld [vmem:[%s3] sm:$0x1]
      %v566 = vlaneseq
      %v567 = vshrl.u32 %v566, 7
      %v568 = vsub.s32 0, %v567
      %v569 = vrot.slane %v564, %v568
      %v571 = vadd.f32 %v563, %v569
      %572 = vst [vmem:[#allocation3] sm:$0x3] %v571
    $region25: #{tpu_custom_call.1} parent=1 // pred_fallthru
      _
    // Predicated region
    $region26: #{tpu_custom_call.1} parent=1 // pred_check
      _
    $region27: #{tpu_custom_call.1} parent=1 // pred_check_branch
      %574 = sbr.rel (0) target = $region29
    $region28: #{tpu_custom_call.1} parent=1 // pred_region
      %s576 = ssub.s32 32, 32
      %577 = vsyncadd [#allocation4], %s576
      %s579 = sshll.u32 [#allocation3], 4
      %s580 = int_to_ptr.vmem [resolvable:$true] %s579
      %582 = dma.vmem_to_hbm [thread:$0]  %s580, 32, %s4, [#allocation4]
    $region29: #{tpu_custom_call.1} parent=1 // pred_fallthru
      _
    // Predicated region
    $region30: #{tpu_custom_call.1} parent=1 // pred_check
      _
    $region31: #{tpu_custom_call.1} parent=1 // pred_check_branch
      %584 = sbr.rel (0) target = $region33
    $region32: #{tpu_custom_call.1} parent=1 // pred_region
      %585 = dma.done [#allocation4], 32
    $region33: #{tpu_custom_call.1} parent=1 // pred_fallthru
      _
    %586 = vsyncpa [#allocation4], 1

</llo_original>
